<compile_context>
chip_gen: v7x
topology: tpu7x:2x2x1
jax: 0.10.0
libtpu: 0.0.40
codegen_flags: <defaults>
</compile_context>

<pallas_src>
import math

import jax
import jax.numpy as jnp
from jax import lax
from jax.experimental import pallas as pl
from jax.experimental.pallas import tpu as pltpu


def _round_up(v, m):
    return ((v + m - 1) // m) * m


def _make_kernel(mxu_bf16):
    def kernel(x_ref, w1_ref, b1_ref, w2_ref, b2_ref, o_ref):
        # x_ref:  [TM, 2]      (streamed, double-buffered)
        # w1_ref: [2, H]       b1_ref: [1, H]     (VMEM-resident)
        # w2_ref: [H, Np]      b2_ref: [1, Np]    (VMEM-resident; Np = N padded to 128)
        # o_ref:  [TM, Np]
        x = x_ref[...]
        w1 = w1_ref[...]
        # First Linear has K=2: two broadcast FMAs on the VPU.
        h = x[:, 0:1] * w1[0:1, :] + x[:, 1:2] * w1[1:2, :] + b1_ref[...]
        # Exact (erf-based) GELU, matching torch.nn.GELU() default.
        g = 0.5 * h * (1.0 + lax.erf(h * (1.0 / math.sqrt(2.0))))
        if mxu_bf16:
            g = g.astype(jnp.bfloat16)  # one-pass bf16 MXU matmul; w2 pre-cast in wrapper
        # Second Linear (K=H, N=2H) on the MXU with f32 accumulation.
        y = jnp.dot(g, w2_ref[...], preferred_element_type=jnp.float32) + b2_ref[...]
        o_ref[...] = y.astype(o_ref.dtype)

    return kernel


def const_encoder_pallas(x, w1, b1, w2, b2, *, tm_max=4096,
                         out_dtype=jnp.float32, mxu_bf16=False):
    """x: [..., 2]. Returns [..., 2*H] in `out_dtype` (default f32, matching PyTorch)."""
    in_dim = x.shape[-1]
    assert in_dim == 2, f"ConstEncoder expects feature dim 2, got {in_dim}"
    hid = w1.shape[1]
    out_dim = w2.shape[1]
    assert w1.shape == (in_dim, hid) and w2.shape == (hid, out_dim)
    assert b1.shape[-1] == hid and b2.shape[-1] == out_dim

    lead = x.shape[:-1]
    m = math.prod(lead) if lead else 1
    xf = x.reshape(m, in_dim).astype(jnp.float32)

    # --- Padding-aware tile selection: pick tile COUNT first, then tile size. ---
    n_tiles = max(1, pl.cdiv(m, tm_max))
    if n_tiles > 1 and n_tiles % 2:
        n_tiles += 1  # even tile count -> balanced work across v7x's two TensorCores
    tm = _round_up(pl.cdiv(m, n_tiles), 8)
    m_pad = tm * n_tiles
    if m_pad != m:
        xf = jnp.pad(xf, ((0, m_pad - m), (0, 0)))
    grid = (n_tiles,)

    # --- Lane-dense output insurance: pad N to a multiple of 128 (no-op for H=64). ---
    n_pad = _round_up(out_dim, 128)
    w2_dtype = jnp.bfloat16 if mxu_bf16 else jnp.float32
    w1f = w1.astype(jnp.float32)
    b1f = b1.reshape(1, hid).astype(jnp.float32)
    w2f = w2.astype(w2_dtype)
    b2f = b2.reshape(1, out_dim).astype(jnp.float32)
    if n_pad != out_dim:
        w2f = jnp.pad(w2f, ((0, 0), (0, n_pad - out_dim)))
        b2f = jnp.pad(b2f, ((0, 0), (0, n_pad - out_dim)))

    out_bytes = jnp.dtype(out_dtype).itemsize
    w2_bytes = jnp.dtype(w2_dtype).itemsize

    # Advisory cost estimate — reflects the padded work actually performed.
    cost = pl.CostEstimate(
        flops=2 * m_pad * (in_dim * hid + hid * n_pad),
        transcendentals=m_pad * hid,  # one erf per hidden element
        bytes_accessed=(4 * m_pad * in_dim            # x read
                        + out_bytes * m_pad * n_pad   # output write (dominant)
                        + 4 * (in_dim * hid + hid)    # w1, b1
                        + w2_bytes * hid * n_pad + 4 * n_pad),  # w2, b2
    )

    # Explicit VMEM budget: double-buffered x (lane-padded to 128) + double-buffered
    # output + resident weights, with headroom. Never below the 32 MiB default, capped
    # so it stays inside v7x's 64 MiB physical VMEM per TensorCore.
    xbuf = tm * 128 * 4
    obuf = tm * n_pad * out_bytes
    resident = 4 * (8 * 128 * 2) + w2_bytes * _round_up(hid, 8) * n_pad + 4 * n_pad
    vmem_limit = int(min(64 * 1024 * 1024,
                         max(32 * 1024 * 1024, 2 * (xbuf + obuf) + resident + (4 << 20))))

    out = pl.pallas_call(
        _make_kernel(mxu_bf16),
        out_shape=jax.ShapeDtypeStruct((m_pad, n_pad), out_dtype),
        grid=grid,
        in_specs=[
            pl.BlockSpec((tm, in_dim), lambda i: (i, 0)),     # streamed per tile
            pl.BlockSpec((in_dim, hid), lambda i: (0, 0)),    # resident
            pl.BlockSpec((1, hid), lambda i: (0, 0)),         # resident
            pl.BlockSpec((hid, n_pad), lambda i: (0, 0)),     # resident
            pl.BlockSpec((1, n_pad), lambda i: (0, 0)),       # resident
        ],
        out_specs=pl.BlockSpec((tm, n_pad), lambda i: (i, 0)),
        compiler_params=pltpu.CompilerParams(
            dimension_semantics=("parallel",),   # shards the row grid across v7x's 2 TCs
            vmem_limit_bytes=vmem_limit,
        ),
        cost_estimate=cost,
    )(xf, w1f, b1f, w2f, b2f)

    if m_pad != m:
        out = out[:m]
    if n_pad != out_dim:
        out = out[:, :out_dim]
    return out.reshape(*lead, out_dim)


def init_params(key, hid_dim=64):
    """Deterministic init mimicking nn.Linear default (uniform +-1/sqrt(fan_in)).

    Weights are stored transposed relative to PyTorch: [in_features, out_features].
    """
    k1, k2, k3, k4 = jax.random.split(key, 4)
    in1, out1 = 2, hid_dim
    in2, out2 = hid_dim, hid_dim * 2
    lim1 = 1.0 / math.sqrt(in1)
    lim2 = 1.0 / math.sqrt(in2)
    w1 = jax.random.uniform(k1, (in1, out1), jnp.float32, -lim1, lim1)
    b1 = jax.random.uniform(k2, (out1,), jnp.float32, -lim1, lim1)
    w2 = jax.random.uniform(k3, (in2, out2), jnp.float32, -lim2, lim2)
    b2 = jax.random.uniform(k4, (out2,), jnp.float32, -lim2, lim2)
    return w1, b1, w2, b2


def const_encoder_ref(x, w1, b1, w2, b2):
    h = x @ w1 + b1
    g = 0.5 * h * (1.0 + lax.erf(h / math.sqrt(2.0)))
    return g @ w2 + b2


if __name__ == "__main__":
    hid_dim = 64  # matches the PyTorch module default; out_dim = 128 (lane-dense)
    key = jax.random.PRNGKey(0)
    kx, kx2, kp = jax.random.split(key, 3)
    w1, b1, w2, b2 = init_params(kp, hid_dim)

    # Small shape consistent with the module: [batch=2, seq=8, 2].
    x = jax.random.normal(kx, (2, 8, 2), jnp.float32)
    y = jax.block_until_ready(const_encoder_pallas(x, w1, b1, w2, b2))
    y_ref = const_encoder_ref(x.reshape(-1, 2), w1, b1, w2, b2).reshape(2, 8, 2 * hid_dim)
    assert y.shape == (2, 8, 2 * hid_dim)
    assert jnp.allclose(y, y_ref, atol=1e-5, rtol=1e-5)

    # Multi-tile grid + padding-aware tile sizing (M = 4*520 = 2080, tm_max=512 ->
    # 6 even tiles of 352 rows, only 32 padded rows instead of ~2016 with the old scheme).
    x2 = jax.random.normal(kx2, (4, 520, 2), jnp.float32)
    y2 = jax.block_until_ready(const_encoder_pallas(x2, w1, b1, w2, b2, tm_max=512))
    y2_ref = const_encoder_ref(x2.reshape(-1, 2), w1, b1, w2, b2).reshape(4, 520, 2 * hid_dim)
    assert y2.shape == (4, 520, 2 * hid_dim)
    assert jnp.allclose(y2, y2_ref, atol=1e-5, rtol=1e-5)

    # Optional fast path (numerics-changing, off by default): bf16 MXU operands with f32
    # accumulation + bf16 output. Verified here with a loose tolerance.
    y3 = jax.block_until_ready(
        const_encoder_pallas(x2, w1, b1, w2, b2, mxu_bf16=True, out_dtype=jnp.bfloat16))
    assert jnp.allclose(y3.astype(jnp.float32), y2_ref, atol=5e-2, rtol=5e-2)

    print("KERNEL_OK")
</pallas_src>

<mosaic_0001>
module attributes {stable_mosaic.version = 11 : i64} {
  func.func @kernel(%arg0: i32, %arg1: memref<16x2xf32, #tpu.memory_space<vmem>>, %arg2: memref<2x64xf32, #tpu.memory_space<vmem>>, %arg3: memref<1x64xf32, #tpu.memory_space<vmem>>, %arg4: memref<64x128xf32, #tpu.memory_space<vmem>>, %arg5: memref<1x128xf32, #tpu.memory_space<vmem>>, %arg6: memref<16x128xf32, #tpu.memory_space<vmem>>) attributes {dimension_semantics = [#tpu.dimension_semantics<parallel>], iteration_bounds = array<i64: 1>, scalar_prefetch = 0 : i64, scratch_operands = 0 : i64, tpu.core_type = #tpu.core_type<tc>, window_params = [{transform_indices = @transform_0, window_bounds = array<i64: 16, 2>}, {pipeline_mode = #tpu.pipeline_mode<synchronous>, transform_indices = @transform_1, window_bounds = array<i64: 2, 64>}, {pipeline_mode = #tpu.pipeline_mode<synchronous>, transform_indices = @transform_2, window_bounds = array<i64: 1, 64>}, {pipeline_mode = #tpu.pipeline_mode<synchronous>, transform_indices = @transform_3, window_bounds = array<i64: 64, 128>}, {pipeline_mode = #tpu.pipeline_mode<synchronous>, transform_indices = @transform_4, window_bounds = array<i64: 1, 128>}, {transform_indices = @transform_5, window_bounds = array<i64: 16, 128>}]} {
    %c0 = arith.constant 0 : index
    %c0_0 = arith.constant 0 : index
    %0 = vector.load %arg1[%c0, %c0_0] : memref<16x2xf32, #tpu.memory_space<vmem>>, vector<16x2xf32>
    %c0_1 = arith.constant 0 : index
    %c0_2 = arith.constant 0 : index
    %1 = vector.load %arg2[%c0_1, %c0_2] : memref<2x64xf32, #tpu.memory_space<vmem>>, vector<2x64xf32>
    %2 = vector.extract_strided_slice %0 {offsets = [0, 0], sizes = [16, 1], strides = [1, 1]} : vector<16x2xf32> to vector<16x1xf32>
    %3 = vector.extract_strided_slice %1 {offsets = [0, 0], sizes = [1, 64], strides = [1, 1]} : vector<2x64xf32> to vector<1x64xf32>
    %4 = vector.broadcast %2 : vector<16x1xf32> to vector<16x64xf32>
    %5 = vector.broadcast %3 : vector<1x64xf32> to vector<16x64xf32>
    %6 = arith.mulf %4, %5 : vector<16x64xf32>
    %7 = vector.extract_strided_slice %0 {offsets = [0, 1], sizes = [16, 1], strides = [1, 1]} : vector<16x2xf32> to vector<16x1xf32>
    %8 = vector.extract_strided_slice %1 {offsets = [1, 0], sizes = [1, 64], strides = [1, 1]} : vector<2x64xf32> to vector<1x64xf32>
    %9 = vector.broadcast %7 : vector<16x1xf32> to vector<16x64xf32>
    %10 = vector.broadcast %8 : vector<1x64xf32> to vector<16x64xf32>
    %11 = arith.mulf %9, %10 : vector<16x64xf32>
    %12 = arith.addf %6, %11 : vector<16x64xf32>
    %c0_3 = arith.constant 0 : index
    %c0_4 = arith.constant 0 : index
    %13 = vector.load %arg3[%c0_3, %c0_4] : memref<1x64xf32, #tpu.memory_space<vmem>>, vector<1x64xf32>
    %14 = vector.broadcast %13 : vector<1x64xf32> to vector<16x64xf32>
    %15 = arith.addf %12, %14 : vector<16x64xf32>
    %cst = arith.constant 5.000000e-01 : f32
    %16 = vector.broadcast %cst : f32 to vector<16x64xf32>
    %17 = arith.mulf %16, %15 : vector<16x64xf32>
    %cst_5 = arith.constant 0.707106769 : f32
    %18 = vector.broadcast %cst_5 : f32 to vector<16x64xf32>
    %19 = arith.mulf %15, %18 : vector<16x64xf32>
    %20 = math.erf %19 : vector<16x64xf32>
    %cst_6 = arith.constant 1.000000e+00 : f32
    %21 = vector.broadcast %cst_6 : f32 to vector<16x64xf32>
    %22 = arith.addf %21, %20 : vector<16x64xf32>
    %23 = arith.mulf %17, %22 : vector<16x64xf32>
    %c0_7 = arith.constant 0 : index
    %c0_8 = arith.constant 0 : index
    %24 = vector.load %arg4[%c0_7, %c0_8] : memref<64x128xf32, #tpu.memory_space<vmem>>, vector<64x128xf32>
    %cst_9 = arith.constant dense<0.000000e+00> : vector<16x128xf32>
    %25 = tpu.matmul %23, %24, %cst_9 {dimension_numbers = #tpu.dot_dimension_numbers<[1], [0], [0], [1], [0, 0, 1, 1], [], []>} : vector<16x64xf32>, vector<64x128xf32>, vector<16x128xf32> -> vector<16x128xf32>
    %c0_10 = arith.constant 0 : index
    %c0_11 = arith.constant 0 : index
    %26 = vector.load %arg5[%c0_10, %c0_11] : memref<1x128xf32, #tpu.memory_space<vmem>>, vector<1x128xf32>
    %27 = vector.broadcast %26 : vector<1x128xf32> to vector<16x128xf32>
    %28 = arith.addf %25, %27 : vector<16x128xf32>
    %c0_12 = arith.constant 0 : index
    %c0_13 = arith.constant 0 : index
    %29 = vector.load %arg6[%c0_12, %c0_13] : memref<16x128xf32, #tpu.memory_space<vmem>>, vector<16x128xf32>
    tpu.vector_store %arg6[%c0_12, %c0_13], %28 {strides = array<i32>} : memref<16x128xf32, #tpu.memory_space<vmem>>, vector<16x128xf32>,
    return
  }
  func.func @transform_0(%arg0: i32) -> (i32, i32) {
    %c0_i32 = arith.constant 0 : i32
    %c0_i32_0 = arith.constant 0 : i32
    return %arg0, %c0_i32 : i32, i32
  }
  func.func @transform_1(%arg0: i32) -> (i32, i32) {
    %c0_i32 = arith.constant 0 : i32
    %c0_i32_0 = arith.constant 0 : i32
    %c0_i32_1 = arith.constant 0 : i32
    return %c0_i32, %c0_i32_0 : i32, i32
  }
  func.func @transform_2(%arg0: i32) -> (i32, i32) {
    %c0_i32 = arith.constant 0 : i32
    %c0_i32_0 = arith.constant 0 : i32
    %c0_i32_1 = arith.constant 0 : i32
    return %c0_i32, %c0_i32_0 : i32, i32
  }
  func.func @transform_3(%arg0: i32) -> (i32, i32) {
    %c0_i32 = arith.constant 0 : i32
    %c0_i32_0 = arith.constant 0 : i32
    %c0_i32_1 = arith.constant 0 : i32
    return %c0_i32, %c0_i32_0 : i32, i32
  }
  func.func @transform_4(%arg0: i32) -> (i32, i32) {
    %c0_i32 = arith.constant 0 : i32
    %c0_i32_0 = arith.constant 0 : i32
    %c0_i32_1 = arith.constant 0 : i32
    return %c0_i32, %c0_i32_0 : i32, i32
  }
  func.func @transform_5(%arg0: i32) -> (i32, i32) {
    %c0_i32 = arith.constant 0 : i32
    %c0_i32_0 = arith.constant 0 : i32
    return %arg0, %c0_i32 : i32, i32
  }
}

</mosaic_0001>

<llo_original>
// kernel: tpu_custom_call.1
$region0: #{tpu_custom_call.1}
  #allocation0 [shape = 'u32[]', space=smem, size = 0x4, offset = 0x4, fixed_abs, tag = 'smem constant byte address 0x4 - core index']
  #allocation1 [shape = 'u32[144,128]{1,0:T(1,128)}', space=vmem, size = 0x12000, scoped, tag = 'internal scratch']
  %s0 = inlined_call_operand.vmem [shape: f32[16,2], index: 0, kind: input, shape index: {}]
  %s1 = inlined_call_operand.vmem [shape: f32[2,64], index: 1, kind: input, shape index: {}]
  %s2 = inlined_call_operand.vmem [shape: f32[1,64], index: 2, kind: input, shape index: {}]
  %s3 = inlined_call_operand.hbm [shape: f32[64,128], index: 3, kind: input, shape index: {}]
  %s4 = inlined_call_operand.vmem [shape: f32[1,128], index: 4, kind: input, shape index: {}]
  %s5 = inlined_call_operand.hbm [shape: f32[16,128], index: 5, kind: output, shape index: {}]
  %s6 = sld [smem:[#allocation0]]
  $region34: #{tpu_custom_call.1} parent=0
    _
  %s8 = ssub.s32 1, %s6
  %s9 = scalar_select 0, %s8, %s6
  $region1: #{tpu_custom_call.1} parent=0
    #allocation2 [shape = 'u8[32768]{0}', space=vmem, size = 0x8000, scoped, tag = 'input window, operand 3, single buffered']
    #allocation3 [shape = 's32[1]{0}', space=sflag, size = 0x4, scoped, tag = 'scoped memory for tpu_custom_call.1']
    #allocation4 [shape = 's32[1]{0}', space=sflag, size = 0x4, scoped, tag = 'scoped memory for tpu_custom_call.1']
    #allocation5 [shape = 'u8[8192]{0}', space=vmem, size = 0x2000, scoped, tag = 'output window, operand 0, single buffered']
    %10 = vsyncpa [#allocation3], 0
    %11 = vsyncpa [#allocation4], 0
    // Predicated region
    $region2: #{tpu_custom_call.1} parent=1 // pred_check
      _
    $region3: #{tpu_custom_call.1} parent=1 // pred_check_branch
      %13 = sbr.rel (0) target = $region5
    $region4: #{tpu_custom_call.1} parent=1 // pred_region
      _
    $region5: #{tpu_custom_call.1} parent=1 // pred_fallthru
      _
    // Predicated region
    $region6: #{tpu_custom_call.1} parent=1 // pred_check
      _
    $region7: #{tpu_custom_call.1} parent=1 // pred_check_branch
      %15 = sbr.rel (0) target = $region9
    $region8: #{tpu_custom_call.1} parent=1 // pred_region
      _
    $region9: #{tpu_custom_call.1} parent=1 // pred_fallthru
      _
    // Predicated region
    $region10: #{tpu_custom_call.1} parent=1 // pred_check
      _
    $region11: #{tpu_custom_call.1} parent=1 // pred_check_branch
      %17 = sbr.rel (0) target = $region13
    $region12: #{tpu_custom_call.1} parent=1 // pred_region
      _
    $region13: #{tpu_custom_call.1} parent=1 // pred_fallthru
      _
    // Predicated region
    $region14: #{tpu_custom_call.1} parent=1 // pred_check
      _
    $region15: #{tpu_custom_call.1} parent=1 // pred_check_branch
      %19 = sbr.rel (0) target = $region17
    $region16: #{tpu_custom_call.1} parent=1 // pred_region
      %s21 = ssub.s32 1024, 1024
      %22 = vsyncadd [#allocation3], %s21
      %s23 = sshll.u32 [#allocation2], 4
      %s24 = int_to_ptr.vmem [resolvable:$true] %s23
      %29 = dma.hbm_to_vmem [thread:$0]  %s3, 1024, %s24, [#allocation3], 128, 128, 8
    $region17: #{tpu_custom_call.1} parent=1 // pred_fallthru
      _
    // Predicated region
    $region18: #{tpu_custom_call.1} parent=1 // pred_check
      _
    $region19: #{tpu_custom_call.1} parent=1 // pred_check_branch
      %31 = sbr.rel (0) target = $region21
    $region20: #{tpu_custom_call.1} parent=1 // pred_region
      _
    $region21: #{tpu_custom_call.1} parent=1 // pred_fallthru
      _
    // Predicated region
    $region22: #{tpu_custom_call.1} parent=1 // pred_check
      _
    $region23: #{tpu_custom_call.1} parent=1 // pred_check_branch
      %33 = sbr.rel (0) target = $region25
    $region24: #{tpu_custom_call.1} parent=1 // pred_region
      %34 = dma.done [#allocation3], 1024
    $region25: #{tpu_custom_call.1} parent=1 // pred_fallthru
      _
    %v35 = vld [vmem:[%s0] sm:$0xff]
    %v36 = vld [vmem:[%s0 + $0x8] sm:$0xff]
    %v37 = vld [vmem:[%s1] sm:$0x3]
    %39 = vset.pattern.permute.xlu0 0
    %40 = vperm.xlu0 %39, %v35
    %v41 = vpop.permute.xlu0 %40
    %44 = vset.pattern.permute.xlu0 0
    %45 = vperm.xlu0 %44, %v36
    %v46 = vpop.permute.xlu0 %45
    %v48 = vlaneseq
    %v49 = vshrl.u32 %v48, 7
    %v50 = vsub.s32 0, %v49
    %v51 = vrot.slane %v37, %v50
    %v52 = vmul.f32 %v41, %v51
    %v53 = vmul.f32 %v46, %v51
    %54 = vset.pattern.permute.xlu0 1
    %55 = vperm.xlu0 %54, %v35
    %v56 = vpop.permute.xlu0 %55
    %58 = vset.pattern.permute.xlu0 1
    %59 = vperm.xlu0 %58, %v36
    %v60 = vpop.permute.xlu0 %59
    %v62 = vlaneseq
    %v63 = vshrl.u32 %v62, 7
    %v64 = vsub.s32 1, %v63
    %v65 = vrot.slane %v37, %v64
    %v66 = vmul.f32 %v56, %v65
    %v67 = vmul.f32 %v60, %v65
    %v68 = vadd.f32 %v52, %v66
    %v69 = vadd.f32 %v53, %v67
    %v70 = vld [vmem:[%s2] sm:$0x1]
    %v72 = vlaneseq
    %v73 = vshrl.u32 %v72, 7
    %v74 = vsub.s32 0, %v73
    %v75 = vrot.slane %v70, %v74
    %v77 = vadd.f32 %v68, %v75
    %v78 = vadd.f32 %v69, %v75
    %v79 = vmul.f32 %v77, 0.5
    %v80 = vmul.f32 %v78, 0.5
    %v81 = vmul.f32 %v77, 0.70710677
    %v82 = vmul.f32 %v78, 0.70710677
    %v83 = verf.f32.pop %v81
    %v84 = verf.f32.pop %v82
    %v85 = vadd.f32 %v83, 1.0
    %v86 = vadd.f32 %v84, 1.0
    %v87 = vmul.f32 %v79, %v85
    %v88 = vmul.f32 %v80, %v86
    %v89 = vld [vmem:[#allocation2] sm:$0xff]
    %v90 = vld [vmem:[#allocation2 + $0x8] sm:$0xff]
    %v91 = vld [vmem:[#allocation2 + $0x10] sm:$0xff]
    %v92 = vld [vmem:[#allocation2 + $0x18] sm:$0xff]
    %v93 = vld [vmem:[#allocation2 + $0x20] sm:$0xff]
    %v94 = vld [vmem:[#allocation2 + $0x28] sm:$0xff]
    %v95 = vld [vmem:[#allocation2 + $0x30] sm:$0xff]
    %v96 = vld [vmem:[#allocation2 + $0x38] sm:$0xff]
    %v97 = vld [vmem:[%s4] sm:$0x1]
    %v99 = vlaneseq
    %v100 = vshrl.u32 %v99, 7
    %v101 = vsub.s32 0, %v100
    %v102 = vrot.slane %v97, %v101
    %vm104 = vcmask 523264
    %v106 = vsel %vm104, %v87, 0
    %v109 = vsel %vm104, %v88, 0
    %111 = vmatprep.subr.mxu0 0.0
    %112 = vmatpush1.msra.mxu0 %v89
    %113 = vmatprep.subr.mxu0 0.0
    %114 = vmatpush1.msra.mxu0 %v90
    %115 = vmatprep.subr.mxu0 0.0
    %116 = vmatpush1.msra.mxu0 %v91
    %117 = vmatprep.subr.mxu0 0.0
    %118 = vmatpush1.msra.mxu0 %v92
    %119 = vmatprep.subr.mxu0 0.0
    %120 = vmatpush1.msra.mxu0 %v93
    %121 = vmatprep.subr.mxu0 0.0
    %122 = vmatpush1.msra.mxu0 %v94
    %123 = vmatprep.subr.mxu0 0.0
    %124 = vmatpush1.msra.mxu0 %v95
    %125 = vmatprep.subr.mxu0 0.0
    %126 = vmatpush1.msra.mxu0 %v96
    %127 = vmatprep.subr.mxu0 0.0
    %128 = vmatpush1.msra.mxu0 0.0
    %129 = vmatprep.subr.mxu0 0.0
    %130 = vmatpush1.msra.mxu0 0.0
    %131 = vmatprep.subr.mxu0 0.0
    %132 = vmatpush1.msra.mxu0 0.0
    %133 = vmatprep.subr.mxu0 0.0
    %134 = vmatpush1.msra.mxu0 0.0
    %135 = vmatprep.subr.mxu0 0.0
    %136 = vmatpush1.msra.mxu0 0.0
    %137 = vmatprep.subr.mxu0 0.0
    %138 = vmatpush1.msra.mxu0 0.0
    %139 = vmatprep.subr.mxu0 0.0
    %140 = vmatpush1.msra.mxu0 0.0
    %141 = vmatprep.subr.mxu0 0.0
    %142 = vmatpush1.msra.mxu0 0.0
    %143 = vmatprep.subr.mxu0 0.0
    %144 = vmatpush1.msra.mxu0 0.0
    %145 = vmatprep.subr.mxu0 0.0
    %146 = vmatpush1.msra.mxu0 0.0
    %147 = vmatprep.subr.mxu0 0.0
    %148 = vmatpush1.msra.mxu0 0.0
    %149 = vmatprep.subr.mxu0 0.0
    %150 = vmatpush1.msra.mxu0 0.0
    %151 = vmatprep.subr.mxu0 0.0
    %152 = vmatpush1.msra.mxu0 0.0
    %153 = vmatprep.subr.mxu0 0.0
    %154 = vmatpush1.msra.mxu0 0.0
    %155 = vmatprep.subr.mxu0 0.0
    %156 = vmatpush1.msra.mxu0 0.0
    %157 = vmatprep.subr.mxu0 0.0
    %158 = vmatpush1.msra.mxu0 0.0
    %159 = vmatprep.subr.mxu0 0.0
    %160 = vmatpush1.msra.mxu0 0.0
    %161 = vmatprep.subr.mxu0 0.0
    %162 = vmatpush1.msra.mxu0 0.0
    %163 = vmatprep.subr.mxu0 0.0
    %164 = vmatpush1.msra.mxu0 0.0
    %165 = vmatprep.subr.mxu0 0.0
    %166 = vmatpush1.msra.mxu0 0.0
    %167 = vmatprep.subr.mxu0 0.0
    %168 = vmatpush1.msra.mxu0 0.0
    %169 = vmatprep.subr.mxu0 0.0
    %170 = vmatpush1.msra.mxu0 0.0
    %171 = vmatprep.subr.mxu0 0.0
    %172 = vmatpush1.msra.mxu0 0.0
    %173 = vmatprep.subr.mxu0 0.0
    %174 = vmatpush1.msra.mxu0 0.0
    %175 = vmatprep.mubr.f32.mxu0 0.0
    %176 = vmatmul.mubr.f32.gmra.mrb[0].mxu0 %v106
    %v177 = vpop.f32.mrb[0].mxu0
    %v178 = vadd.f32 %v102, %v177
    %v179 = vpop.f32.mrb[0].mxu0
    %180 = vmatprep.mubr.f32.mxu0 0.0
    %181 = vmatmul.mubr.f32.gmra.mrb[0].mxu0 %v109
    %v182 = vpop.f32.mrb[0].mxu0
    %v183 = vadd.f32 %v102, %v182
    %v184 = vpop.f32.mrb[0].mxu0
    %185 = vdwg.mxu0
    %186 = vst [vmem:[#allocation5] sm:$0xff] %v178
    %187 = vst [vmem:[#allocation5 + $0x8] sm:$0xff] %v183
    // Predicated region
    $region26: #{tpu_custom_call.1} parent=1 // pred_check
      _
    $region27: #{tpu_custom_call.1} parent=1 // pred_check_branch
      %189 = sbr.rel (0) target = $region29
    $region28: #{tpu_custom_call.1} parent=1 // pred_region
      %s191 = ssub.s32 256, 256
      %192 = vsyncadd [#allocation4], %s191
      %s193 = sshll.u32 [#allocation5], 4
      %s194 = int_to_ptr.vmem [resolvable:$true] %s193
      %199 = dma.vmem_to_hbm [thread:$0]  %s194, 256, %s5, [#allocation4], 128, 128, 8
    $region29: #{tpu_custom_call.1} parent=1 // pred_fallthru
      _
    // Predicated region
    $region30: #{tpu_custom_call.1} parent=1 // pred_check
      _
    $region31: #{tpu_custom_call.1} parent=1 // pred_check_branch
      %201 = sbr.rel (0) target = $region33
    $region32: #{tpu_custom_call.1} parent=1 // pred_region
      %202 = dma.done [#allocation4], 256
    $region33: #{tpu_custom_call.1} parent=1 // pred_fallthru
      _
    %203 = vsyncpa [#allocation3], 1
    %204 = vsyncpa [#allocation4], 1

</llo_original>
